<compile_context>
chip_gen: v5e
topology: v5e:2x2
jax: 0.10.0
libtpu: 0.0.40
codegen_flags: <defaults>
</compile_context>

<pallas_src>
import jax
import jax.numpy as jnp
from jax.experimental import pallas as pl
from jax.experimental.pallas import tpu as pltpu

IN_FEATURES = 32   # synthetic backbone feature width ("hidden")
HEAD_OUT = 512     # Conv2d(in_features, 512, 1) output channels, as in the module
BT = 8             # batch tile (multiple of 8 -> sublane-dense output store)


def mol_kernel(x_ref, w1_ref, b1_ref, w2_ref, b2_ref, o_ref):
    # x_ref : (Bt, C, HW)   lane-dense: spatial on lanes, channels on sublanes
    # w1_ref: (C, F)        backbone 1x1 conv weight
    # b1_ref: (F, 1)        backbone 1x1 conv bias (column vector -> broadcasts over lanes)
    # w2_ref: (F, 512)      head 1x1 conv weight, pre-scaled by 1/HW in the wrapper
    # b2_ref: (1, 512)      head 1x1 conv bias
    # o_ref : (Bt, 512)
    x = x_ref[...]                         # (Bt, C, HW) f32
    w1 = w1_ref[...]                       # (C, F)
    C = x.shape[1]

    # Backbone stand-in, stage 1: 1x1 conv over channels.
    # K = C is tiny (4) -> do it on the VPU as C broadcast FMAs, not the MXU.
    h = x[:, 0, None, :] * w1[0][None, :, None]          # (Bt, F, HW)
    for c in range(1, C):                                 # unrolled at trace time
        h = h + x[:, c, None, :] * w1[c][None, :, None]
    h = jnp.maximum(h + b1_ref[...][None, :, :], 0.0)     # bias + ReLU, f32

    # Stage 2: global average pool over spatial positions.
    # 1/HW is folded into w2, so this is a plain lane-axis sum.
    pooled = jnp.sum(h, axis=-1)                          # (Bt, F)

    # Head: Conv2d(F, 512, 1) on a 1x1 map == linear. Batched over Bt on the MXU.
    y = jnp.dot(pooled, w2_ref[...], preferred_element_type=jnp.float32) + b2_ref[...]
    o_ref[...] = jnp.maximum(y, 0.0)                      # (Bt, 512), unmasked dense store


def mol_model_forward(x_nchw, w1, b1, w2, b2):
    B, C, H, W = x_nchw.shape
    HW = H * W
    F = w1.shape[1]

    # NCHW -> (B, C, H*W): pure reshape, keeps spatial contiguous on the lane axis.
    x = x_nchw.reshape(B, C, HW).astype(jnp.float32)

    # Pad batch to a multiple of BT (padded rows are computed then discarded).
    B_pad = pl.cdiv(B, BT) * BT
    if B_pad != B:
        x = jnp.pad(x, ((0, B_pad - B), (0, 0), (0, 0)))

    b1_col = b1.reshape(F, 1).astype(jnp.float32)
    w2_scaled = (w2 / HW).astype(jnp.float32)             # fold the average-pool 1/HW
    b2_row = b2.reshape(1, HEAD_OUT).astype(jnp.float32)

    out = pl.pallas_call(
        mol_kernel,
        out_shape=jax.ShapeDtypeStruct((B_pad, HEAD_OUT), jnp.float32),
        grid_spec=pltpu.PrefetchScalarGridSpec(
            num_scalar_prefetch=0,
            grid=(B_pad // BT,),
            in_specs=[
                pl.BlockSpec((BT, C, HW), lambda i: (i, 0, 0)),
                pl.BlockSpec((C, F), lambda i: (0, 0)),
                pl.BlockSpec((F, 1), lambda i: (0, 0)),
                pl.BlockSpec((F, HEAD_OUT), lambda i: (0, 0)),
                pl.BlockSpec((1, HEAD_OUT), lambda i: (0, 0)),
            ],
            out_specs=pl.BlockSpec((BT, HEAD_OUT), lambda i: (i, 0)),
        ),
        compiler_params=pltpu.CompilerParams(
            dimension_semantics=("parallel",)),
    )(x, w1.astype(jnp.float32), b1_col, w2_scaled, b2_row)

    return out[:B]                                        # (B, 512)  == .flatten(1)


def reference_forward(x_nchw, w1, b1, w2, b2):
    B, C, H, W = x_nchw.shape
    x = jnp.transpose(x_nchw, (0, 2, 3, 1)).reshape(B, H * W, C)
    h = jnp.maximum(jnp.einsum('bsc,cf->bsf', x, w1) + b1[None, None, :], 0.0)
    feat = jnp.mean(h, axis=1)                                   # (B, F)
    y = jnp.maximum(feat @ w2 + b2[None, :], 0.0)                # (B, 512)
    return y


if __name__ == "__main__":
    key = jax.random.PRNGKey(0)
    k_x, k_w1, k_b1, k_w2, k_b2 = jax.random.split(key, 5)

    B, C_in, H, W = 2, 4, 16, 16
    x = jax.random.normal(k_x, (B, C_in, H, W), dtype=jnp.float32)

    # deterministic parameter init (synthetic; no checkpoint load)
    w1 = jax.random.normal(k_w1, (C_in, IN_FEATURES), dtype=jnp.float32) * 0.1
    b1 = jax.random.normal(k_b1, (IN_FEATURES,), dtype=jnp.float32) * 0.01
    w2 = jax.random.normal(k_w2, (IN_FEATURES, HEAD_OUT), dtype=jnp.float32) * 0.1
    b2 = jax.random.normal(k_b2, (HEAD_OUT,), dtype=jnp.float32) * 0.01

    out = mol_model_forward(x, w1, b1, w2, b2)
    out = jax.block_until_ready(out)

    ref = reference_forward(x, w1, b1, w2, b2)
    assert out.shape == (B, HEAD_OUT), out.shape
    assert jnp.allclose(out, ref, atol=1e-4, rtol=1e-4), float(jnp.max(jnp.abs(out - ref)))

    print("KERNEL_OK")
</pallas_src>

<mosaic_0001>
module attributes {stable_mosaic.version = 11 : i64} {
  func.func @mol_kernel(%arg0: i32, %arg1: memref<8x4x256xf32, #tpu.memory_space<vmem>>, %arg2: memref<4x32xf32, #tpu.memory_space<vmem>>, %arg3: memref<32x1xf32, #tpu.memory_space<vmem>>, %arg4: memref<32x512xf32, #tpu.memory_space<vmem>>, %arg5: memref<1x512xf32, #tpu.memory_space<vmem>>, %arg6: memref<8x512xf32, #tpu.memory_space<vmem>>) attributes {dimension_semantics = [#tpu.dimension_semantics<parallel>], iteration_bounds = array<i64: 1>, scalar_prefetch = 0 : i64, scratch_operands = 0 : i64, tpu.core_type = #tpu.core_type<tc>, window_params = [{transform_indices = @transform_0, window_bounds = array<i64: 8, 4, 256>}, {pipeline_mode = #tpu.pipeline_mode<synchronous>, transform_indices = @transform_1, window_bounds = array<i64: 4, 32>}, {pipeline_mode = #tpu.pipeline_mode<synchronous>, transform_indices = @transform_2, window_bounds = array<i64: 32, 1>}, {pipeline_mode = #tpu.pipeline_mode<synchronous>, transform_indices = @transform_3, window_bounds = array<i64: 32, 512>}, {pipeline_mode = #tpu.pipeline_mode<synchronous>, transform_indices = @transform_4, window_bounds = array<i64: 1, 512>}, {transform_indices = @transform_5, window_bounds = array<i64: 8, 512>}]} {
    %c0 = arith.constant 0 : index
    %c0_0 = arith.constant 0 : index
    %c0_1 = arith.constant 0 : index
    %0 = vector.load %arg1[%c0, %c0_0, %c0_1] : memref<8x4x256xf32, #tpu.memory_space<vmem>>, vector<8x4x256xf32>
    %c0_2 = arith.constant 0 : index
    %c0_3 = arith.constant 0 : index
    %1 = vector.load %arg2[%c0_2, %c0_3] : memref<4x32xf32, #tpu.memory_space<vmem>>, vector<4x32xf32>
    %2 = vector.extract_strided_slice %0 {offsets = [0, 0, 0], sizes = [8, 1, 256], strides = [1, 1, 1]} : vector<8x4x256xf32> to vector<8x1x256xf32>
    %3 = vector.shape_cast %2 : vector<8x1x256xf32> to vector<8x256xf32>
    %4 = vector.shape_cast %3 : vector<8x256xf32> to vector<8x1x256xf32>
    %5 = vector.extract_strided_slice %1 {offsets = [0, 0], sizes = [1, 32], strides = [1, 1]} : vector<4x32xf32> to vector<1x32xf32>
    %6 = vector.shape_cast %5 : vector<1x32xf32> to vector<32xf32>
    %7 = vector.shape_cast %6 : vector<32xf32> to vector<1x32x1xf32>
    %8 = vector.broadcast %4 : vector<8x1x256xf32> to vector<8x32x256xf32>
    %9 = vector.broadcast %7 : vector<1x32x1xf32> to vector<8x32x256xf32>
    %10 = arith.mulf %8, %9 : vector<8x32x256xf32>
    %11 = vector.extract_strided_slice %0 {offsets = [0, 1, 0], sizes = [8, 1, 256], strides = [1, 1, 1]} : vector<8x4x256xf32> to vector<8x1x256xf32>
    %12 = vector.shape_cast %11 : vector<8x1x256xf32> to vector<8x256xf32>
    %13 = vector.shape_cast %12 : vector<8x256xf32> to vector<8x1x256xf32>
    %14 = vector.extract_strided_slice %1 {offsets = [1, 0], sizes = [1, 32], strides = [1, 1]} : vector<4x32xf32> to vector<1x32xf32>
    %15 = vector.shape_cast %14 : vector<1x32xf32> to vector<32xf32>
    %16 = vector.shape_cast %15 : vector<32xf32> to vector<1x32x1xf32>
    %17 = vector.broadcast %13 : vector<8x1x256xf32> to vector<8x32x256xf32>
    %18 = vector.broadcast %16 : vector<1x32x1xf32> to vector<8x32x256xf32>
    %19 = arith.mulf %17, %18 : vector<8x32x256xf32>
    %20 = arith.addf %10, %19 : vector<8x32x256xf32>
    %21 = vector.extract_strided_slice %0 {offsets = [0, 2, 0], sizes = [8, 1, 256], strides = [1, 1, 1]} : vector<8x4x256xf32> to vector<8x1x256xf32>
    %22 = vector.shape_cast %21 : vector<8x1x256xf32> to vector<8x256xf32>
    %23 = vector.shape_cast %22 : vector<8x256xf32> to vector<8x1x256xf32>
    %24 = vector.extract_strided_slice %1 {offsets = [2, 0], sizes = [1, 32], strides = [1, 1]} : vector<4x32xf32> to vector<1x32xf32>
    %25 = vector.shape_cast %24 : vector<1x32xf32> to vector<32xf32>
    %26 = vector.shape_cast %25 : vector<32xf32> to vector<1x32x1xf32>
    %27 = vector.broadcast %23 : vector<8x1x256xf32> to vector<8x32x256xf32>
    %28 = vector.broadcast %26 : vector<1x32x1xf32> to vector<8x32x256xf32>
    %29 = arith.mulf %27, %28 : vector<8x32x256xf32>
    %30 = arith.addf %20, %29 : vector<8x32x256xf32>
    %31 = vector.extract_strided_slice %0 {offsets = [0, 3, 0], sizes = [8, 1, 256], strides = [1, 1, 1]} : vector<8x4x256xf32> to vector<8x1x256xf32>
    %32 = vector.shape_cast %31 : vector<8x1x256xf32> to vector<8x256xf32>
    %33 = vector.shape_cast %32 : vector<8x256xf32> to vector<8x1x256xf32>
    %34 = vector.extract_strided_slice %1 {offsets = [3, 0], sizes = [1, 32], strides = [1, 1]} : vector<4x32xf32> to vector<1x32xf32>
    %35 = vector.shape_cast %34 : vector<1x32xf32> to vector<32xf32>
    %36 = vector.shape_cast %35 : vector<32xf32> to vector<1x32x1xf32>
    %37 = vector.broadcast %33 : vector<8x1x256xf32> to vector<8x32x256xf32>
    %38 = vector.broadcast %36 : vector<1x32x1xf32> to vector<8x32x256xf32>
    %39 = arith.mulf %37, %38 : vector<8x32x256xf32>
    %40 = arith.addf %30, %39 : vector<8x32x256xf32>
    %c0_4 = arith.constant 0 : index
    %c0_5 = arith.constant 0 : index
    %41 = vector.load %arg3[%c0_4, %c0_5] : memref<32x1xf32, #tpu.memory_space<vmem>>, vector<32x1xf32>
    %42 = vector.shape_cast %41 : vector<32x1xf32> to vector<1x32x1xf32>
    %43 = vector.broadcast %42 : vector<1x32x1xf32> to vector<8x32x256xf32>
    %44 = arith.addf %40, %43 : vector<8x32x256xf32>
    %cst = arith.constant 0.000000e+00 : f32
    %45 = vector.broadcast %cst : f32 to vector<8x32x256xf32>
    %46 = arith.maximumf %44, %45 : vector<8x32x256xf32>
    %cst_6 = arith.constant dense<0.000000e+00> : vector<8x32xf32>
    %47 = vector.multi_reduction <add>, %46, %cst_6 [2] : vector<8x32x256xf32> to vector<8x32xf32>
    %c0_7 = arith.constant 0 : index
    %c0_8 = arith.constant 0 : index
    %48 = vector.load %arg4[%c0_7, %c0_8] : memref<32x512xf32, #tpu.memory_space<vmem>>, vector<32x512xf32>
    %cst_9 = arith.constant dense<0.000000e+00> : vector<8x512xf32>
    %49 = tpu.matmul %47, %48, %cst_9 {dimension_numbers = #tpu.dot_dimension_numbers<[1], [0], [0], [1], [0, 0, 1, 1], [], []>} : vector<8x32xf32>, vector<32x512xf32>, vector<8x512xf32> -> vector<8x512xf32>
    %c0_10 = arith.constant 0 : index
    %c0_11 = arith.constant 0 : index
    %50 = vector.load %arg5[%c0_10, %c0_11] : memref<1x512xf32, #tpu.memory_space<vmem>>, vector<1x512xf32>
    %51 = vector.broadcast %50 : vector<1x512xf32> to vector<8x512xf32>
    %52 = arith.addf %49, %51 : vector<8x512xf32>
    %cst_12 = arith.constant 0.000000e+00 : f32
    %53 = vector.broadcast %cst_12 : f32 to vector<8x512xf32>
    %54 = arith.maximumf %52, %53 : vector<8x512xf32>
    %c0_13 = arith.constant 0 : index
    %c0_14 = arith.constant 0 : index
    %55 = vector.load %arg6[%c0_13, %c0_14] : memref<8x512xf32, #tpu.memory_space<vmem>>, vector<8x512xf32>
    tpu.vector_store %arg6[%c0_13, %c0_14], %54 {strides = array<i32>} : memref<8x512xf32, #tpu.memory_space<vmem>>, vector<8x512xf32>,
    return
  }
  func.func @transform_0(%arg0: i32) -> (i32, i32, i32) {
    %c0_i32 = arith.constant 0 : i32
    %c0_i32_0 = arith.constant 0 : i32
    %c0_i32_1 = arith.constant 0 : i32
    return %arg0, %c0_i32, %c0_i32_0 : i32, i32, i32
  }
  func.func @transform_1(%arg0: i32) -> (i32, i32) {
    %c0_i32 = arith.constant 0 : i32
    %c0_i32_0 = arith.constant 0 : i32
    %c0_i32_1 = arith.constant 0 : i32
    return %c0_i32, %c0_i32_0 : i32, i32
  }
  func.func @transform_2(%arg0: i32) -> (i32, i32) {
    %c0_i32 = arith.constant 0 : i32
    %c0_i32_0 = arith.constant 0 : i32
    %c0_i32_1 = arith.constant 0 : i32
    return %c0_i32, %c0_i32_0 : i32, i32
  }
  func.func @transform_3(%arg0: i32) -> (i32, i32) {
    %c0_i32 = arith.constant 0 : i32
    %c0_i32_0 = arith.constant 0 : i32
    %c0_i32_1 = arith.constant 0 : i32
    return %c0_i32, %c0_i32_0 : i32, i32
  }
  func.func @transform_4(%arg0: i32) -> (i32, i32) {
    %c0_i32 = arith.constant 0 : i32
    %c0_i32_0 = arith.constant 0 : i32
    %c0_i32_1 = arith.constant 0 : i32
    return %c0_i32, %c0_i32_0 : i32, i32
  }
  func.func @transform_5(%arg0: i32) -> (i32, i32) {
    %c0_i32 = arith.constant 0 : i32
    %c0_i32_0 = arith.constant 0 : i32
    return %arg0, %c0_i32 : i32, i32
  }
}

</mosaic_0001>

<llo_original>
// kernel: tpu_custom_call.1
$region0: #{tpu_custom_call.1}
  #allocation0 [shape = 'u32[]', space=smem, size = 0x4, offset = 0x4, fixed_abs, tag = 'smem constant byte address 0x4 - core index']
  #allocation1 [shape = 'u32[72,128]{1,0:T(1,128)}', space=vmem, size = 0x9000, scoped, tag = 'internal scratch']
  %s0 = inlined_call_operand.hbm [shape: f32[8,4,256], index: 0, kind: input, shape index: {}]
  %s1 = inlined_call_operand.vmem [shape: f32[4,32], index: 1, kind: input, shape index: {}]
  %s2 = inlined_call_operand.vmem [shape: f32[32,1], index: 2, kind: input, shape index: {}]
  %s3 = inlined_call_operand.hbm [shape: f32[32,512], index: 3, kind: input, shape index: {}]
  %s4 = inlined_call_operand.vmem [shape: f32[1,512], index: 4, kind: input, shape index: {}]
  %s5 = inlined_call_operand.hbm [shape: f32[8,512], index: 5, kind: output, shape index: {}]
  %s6 = sld [smem:[#allocation0]]
  $region38: #{tpu_custom_call.1} parent=0
    _
  %s8 = ssub.s32 1, %s6
  %s9 = scalar_select 0, %s8, %s6
  $region1: #{tpu_custom_call.1} parent=0
    #allocation2 [shape = 'u8[32768]{0}', space=vmem, size = 0x8000, scoped, tag = 'input window, operand 0, single buffered']
    #allocation3 [shape = 's32[1]{0}', space=sflag, size = 0x4, scoped, tag = 'scoped memory for tpu_custom_call.1']
    #allocation4 [shape = 's32[1]{0}', space=sflag, size = 0x4, scoped, tag = 'scoped memory for tpu_custom_call.1']
    #allocation5 [shape = 'u8[65536]{0}', space=vmem, size = 0x10000, scoped, tag = 'input window, operand 3, single buffered']
    #allocation6 [shape = 's32[1]{0}', space=sflag, size = 0x4, scoped, tag = 'scoped memory for tpu_custom_call.1']
    #allocation7 [shape = 'u8[16384]{0}', space=vmem, size = 0x4000, scoped, tag = 'output window, operand 0, single buffered']
    %10 = vsyncpa [#allocation3], 0
    %11 = vsyncpa [#allocation6], 0
    %12 = vsyncpa [#allocation4], 0
    // Predicated region
    $region2: #{tpu_custom_call.1} parent=1 // pred_check
      _
    $region3: #{tpu_custom_call.1} parent=1 // pred_check_branch
      %14 = sbr.rel (0) target = $region5
    $region4: #{tpu_custom_call.1} parent=1 // pred_region
      %16 = vsyncadd [#allocation3], 0
      %s17 = sshll.u32 %s0, 4
      %s18 = int_to_ptr.hbm [resolvable:$true] %s17
      %s19 = sshll.u32 [#allocation2], 4
      %s20 = int_to_ptr.vmem [resolvable:$true] %s19
      %25 = dma.hbm_to_vmem [thread:$0]  %s18, 1024, %s20, [#allocation3], 128, 128, 8
    $region5: #{tpu_custom_call.1} parent=1 // pred_fallthru
      _
    // Predicated region
    $region6: #{tpu_custom_call.1} parent=1 // pred_check
      _
    $region7: #{tpu_custom_call.1} parent=1 // pred_check_branch
      %27 = sbr.rel (0) target = $region9
    $region8: #{tpu_custom_call.1} parent=1 // pred_region
      _
    $region9: #{tpu_custom_call.1} parent=1 // pred_fallthru
      _
    // Predicated region
    $region10: #{tpu_custom_call.1} parent=1 // pred_check
      _
    $region11: #{tpu_custom_call.1} parent=1 // pred_check_branch
      %29 = sbr.rel (0) target = $region13
    $region12: #{tpu_custom_call.1} parent=1 // pred_region
      _
    $region13: #{tpu_custom_call.1} parent=1 // pred_fallthru
      _
    // Predicated region
    $region14: #{tpu_custom_call.1} parent=1 // pred_check
      _
    $region15: #{tpu_custom_call.1} parent=1 // pred_check_branch
      %31 = sbr.rel (0) target = $region17
    $region16: #{tpu_custom_call.1} parent=1 // pred_region
      %33 = vsyncadd [#allocation6], 0
      %s34 = sshll.u32 %s3, 4
      %s35 = int_to_ptr.hbm [resolvable:$true] %s34
      %s36 = sshll.u32 [#allocation5], 4
      %s37 = int_to_ptr.vmem [resolvable:$true] %s36
      %42 = dma.hbm_to_vmem [thread:$0]  %s35, 2048, %s37, [#allocation6], 512, 512, 32
    $region17: #{tpu_custom_call.1} parent=1 // pred_fallthru
      _
    // Predicated region
    $region18: #{tpu_custom_call.1} parent=1 // pred_check
      _
    $region19: #{tpu_custom_call.1} parent=1 // pred_check_branch
      %44 = sbr.rel (0) target = $region21
    $region20: #{tpu_custom_call.1} parent=1 // pred_region
      _
    $region21: #{tpu_custom_call.1} parent=1 // pred_fallthru
      _
    // Predicated region
    $region22: #{tpu_custom_call.1} parent=1 // pred_check
      _
    $region23: #{tpu_custom_call.1} parent=1 // pred_check_branch
      %46 = sbr.rel (0) target = $region25
    $region24: #{tpu_custom_call.1} parent=1 // pred_region
      %48 = dma.done [#allocation3], 1024
    $region25: #{tpu_custom_call.1} parent=1 // pred_fallthru
      _
    // Predicated region
    $region26: #{tpu_custom_call.1} parent=1 // pred_check
      _
    $region27: #{tpu_custom_call.1} parent=1 // pred_check_branch
      %50 = sbr.rel (0) target = $region29
    $region28: #{tpu_custom_call.1} parent=1 // pred_region
      %52 = dma.done [#allocation6], 2048
    $region29: #{tpu_custom_call.1} parent=1 // pred_fallthru
      _
    %v53 = vld [vmem:[#allocation2] sm:$0xff]
    %v54 = vld [vmem:[#allocation2 + $0x8] sm:$0xff]
    %v55 = vld [vmem:[#allocation2 + $0x10] sm:$0xff]
    %v56 = vld [vmem:[#allocation2 + $0x18] sm:$0xff]
    %v57 = vld [vmem:[#allocation2 + $0x20] sm:$0xff]
    %v58 = vld [vmem:[#allocation2 + $0x28] sm:$0xff]
    %v59 = vld [vmem:[#allocation2 + $0x30] sm:$0xff]
    %v60 = vld [vmem:[#allocation2 + $0x38] sm:$0xff]
    %v61 = vld [vmem:[%s1] sm:$0xf]
    %v62 = vperm.slane %v61, 0
    %v63 = vlaneseq
    %v64 = vshrl.u32 %v63, 7
    %66 = vset.pattern.permute.xlu0 %v64
    %67 = vperm.xlu0 %66, %v62
    %v68 = vpop.permute.xlu0 %67
    %v69 = vlaneseq
    %v70 = vshrl.u32 %v69, 7
    %v71 = vadd.s32 %v70, 8
    %72 = vset.pattern.permute.xlu0 %v71
    %73 = vperm.xlu0 %72, %v62
    %v74 = vpop.permute.xlu0 %73
    %v75 = vlaneseq
    %v76 = vshrl.u32 %v75, 7
    %v77 = vadd.s32 %v76, 16
    %78 = vset.pattern.permute.xlu0 %v77
    %79 = vperm.xlu0 %78, %v62
    %v80 = vpop.permute.xlu0 %79
    %v81 = vlaneseq
    %v82 = vshrl.u32 %v81, 7
    %v83 = vadd.s32 %v82, 24
    %84 = vset.pattern.permute.xlu0 %v83
    %85 = vperm.xlu0 %84, %v62
    %v86 = vpop.permute.xlu0 %85
    %v95 = vperm.slane %v53, 0
    %v96 = vperm.slane %v53, 4
    %v97 = vperm.slane %v54, 0
    %v98 = vperm.slane %v54, 4
    %v99 = vperm.slane %v55, 0
    %v100 = vperm.slane %v55, 4
    %v101 = vperm.slane %v56, 0
    %v102 = vperm.slane %v56, 4
    %v103 = vperm.slane %v57, 0
    %v104 = vperm.slane %v57, 4
    %v105 = vperm.slane %v58, 0
    %v106 = vperm.slane %v58, 4
    %v107 = vperm.slane %v59, 0
    %v108 = vperm.slane %v59, 4
    %v109 = vperm.slane %v60, 0
    %v110 = vperm.slane %v60, 4
    %v127 = vperm.slane %v95, 0
    %v128 = vperm.slane %v96, 0
    %v129 = vperm.slane %v97, 0
    %v130 = vperm.slane %v98, 0
    %v131 = vperm.slane %v99, 0
    %v132 = vperm.slane %v100, 0
    %v133 = vperm.slane %v101, 0
    %v134 = vperm.slane %v102, 0
    %v135 = vperm.slane %v103, 0
    %v136 = vperm.slane %v104, 0
    %v137 = vperm.slane %v105, 0
    %v138 = vperm.slane %v106, 0
    %v139 = vperm.slane %v107, 0
    %v140 = vperm.slane %v108, 0
    %v141 = vperm.slane %v109, 0
    %v142 = vperm.slane %v110, 0
    %v143 = vmul.f32 %v127, %v68
    %v144 = vmul.f32 %v128, %v68
    %v145 = vmul.f32 %v127, %v74
    %v146 = vmul.f32 %v128, %v74
    %v147 = vmul.f32 %v127, %v80
    %v148 = vmul.f32 %v128, %v80
    %v149 = vmul.f32 %v127, %v86
    %v150 = vmul.f32 %v128, %v86
    %v151 = vmul.f32 %v129, %v68
    %v152 = vmul.f32 %v130, %v68
    %v153 = vmul.f32 %v129, %v74
    %v154 = vmul.f32 %v130, %v74
    %v155 = vmul.f32 %v129, %v80
    %v156 = vmul.f32 %v130, %v80
    %v157 = vmul.f32 %v129, %v86
    %v158 = vmul.f32 %v130, %v86
    %v159 = vmul.f32 %v131, %v68
    %v160 = vmul.f32 %v132, %v68
    %v161 = vmul.f32 %v131, %v74
    %v162 = vmul.f32 %v132, %v74
    %v163 = vmul.f32 %v131, %v80
    %v164 = vmul.f32 %v132, %v80
    %v165 = vmul.f32 %v131, %v86
    %v166 = vmul.f32 %v132, %v86
    %v167 = vmul.f32 %v133, %v68
    %v168 = vmul.f32 %v134, %v68
    %v169 = vmul.f32 %v133, %v74
    %v170 = vmul.f32 %v134, %v74
    %v171 = vmul.f32 %v133, %v80
    %v172 = vmul.f32 %v134, %v80
    %v173 = vmul.f32 %v133, %v86
    %v174 = vmul.f32 %v134, %v86
    %v175 = vmul.f32 %v135, %v68
    %v176 = vmul.f32 %v136, %v68
    %v177 = vmul.f32 %v135, %v74
    %v178 = vmul.f32 %v136, %v74
    %v179 = vmul.f32 %v135, %v80
    %v180 = vmul.f32 %v136, %v80
    %v181 = vmul.f32 %v135, %v86
    %v182 = vmul.f32 %v136, %v86
    %v183 = vmul.f32 %v137, %v68
    %v184 = vmul.f32 %v138, %v68
    %v185 = vmul.f32 %v137, %v74
    %v186 = vmul.f32 %v138, %v74
    %v187 = vmul.f32 %v137, %v80
    %v188 = vmul.f32 %v138, %v80
    %v189 = vmul.f32 %v137, %v86
    %v190 = vmul.f32 %v138, %v86
    %v191 = vmul.f32 %v139, %v68
    %v192 = vmul.f32 %v140, %v68
    %v193 = vmul.f32 %v139, %v74
    %v194 = vmul.f32 %v140, %v74
    %v195 = vmul.f32 %v139, %v80
    %v196 = vmul.f32 %v140, %v80
    %v197 = vmul.f32 %v139, %v86
    %v198 = vmul.f32 %v140, %v86
    %v199 = vmul.f32 %v141, %v68
    %v200 = vmul.f32 %v142, %v68
    %v201 = vmul.f32 %v141, %v74
    %v202 = vmul.f32 %v142, %v74
    %v203 = vmul.f32 %v141, %v80
    %v204 = vmul.f32 %v142, %v80
    %v205 = vmul.f32 %v141, %v86
    %v206 = vmul.f32 %v142, %v86
    %v207 = vperm.slane %v61, 1
    %v208 = vlaneseq
    %v209 = vshrl.u32 %v208, 7
    %211 = vset.pattern.permute.xlu0 %v209
    %212 = vperm.xlu0 %211, %v207
    %v213 = vpop.permute.xlu0 %212
    %v214 = vlaneseq
    %v215 = vshrl.u32 %v214, 7
    %v216 = vadd.s32 %v215, 8
    %217 = vset.pattern.permute.xlu0 %v216
    %218 = vperm.xlu0 %217, %v207
    %v219 = vpop.permute.xlu0 %218
    %v220 = vlaneseq
    %v221 = vshrl.u32 %v220, 7
    %v222 = vadd.s32 %v221, 16
    %223 = vset.pattern.permute.xlu0 %v222
    %224 = vperm.xlu0 %223, %v207
    %v225 = vpop.permute.xlu0 %224
    %v226 = vlaneseq
    %v227 = vshrl.u32 %v226, 7
    %v228 = vadd.s32 %v227, 24
    %229 = vset.pattern.permute.xlu0 %v228
    %230 = vperm.xlu0 %229, %v207
    %v231 = vpop.permute.xlu0 %230
    %v232 = vperm.slane %v53, 1
    %v233 = vperm.slane %v53, 5
    %v234 = vperm.slane %v54, 1
    %v235 = vperm.slane %v54, 5
    %v236 = vperm.slane %v55, 1
    %v237 = vperm.slane %v55, 5
    %v238 = vperm.slane %v56, 1
    %v239 = vperm.slane %v56, 5
    %v240 = vperm.slane %v57, 1
    %v241 = vperm.slane %v57, 5
    %v242 = vperm.slane %v58, 1
    %v243 = vperm.slane %v58, 5
    %v244 = vperm.slane %v59, 1
    %v245 = vperm.slane %v59, 5
    %v246 = vperm.slane %v60, 1
    %v247 = vperm.slane %v60, 5
    %v264 = vperm.slane %v232, 1
    %v265 = vperm.slane %v233, 1
    %v266 = vperm.slane %v234, 1
    %v267 = vperm.slane %v235, 1
    %v268 = vperm.slane %v236, 1
    %v269 = vperm.slane %v237, 1
    %v270 = vperm.slane %v238, 1
    %v271 = vperm.slane %v239, 1
    %v272 = vperm.slane %v240, 1
    %v273 = vperm.slane %v241, 1
    %v274 = vperm.slane %v242, 1
    %v275 = vperm.slane %v243, 1
    %v276 = vperm.slane %v244, 1
    %v277 = vperm.slane %v245, 1
    %v278 = vperm.slane %v246, 1
    %v279 = vperm.slane %v247, 1
    %v280 = vmul.f32 %v264, %v213
    %v281 = vmul.f32 %v265, %v213
    %v282 = vmul.f32 %v264, %v219
    %v283 = vmul.f32 %v265, %v219
    %v284 = vmul.f32 %v264, %v225
    %v285 = vmul.f32 %v265, %v225
    %v286 = vmul.f32 %v264, %v231
    %v287 = vmul.f32 %v265, %v231
    %v288 = vmul.f32 %v266, %v213
    %v289 = vmul.f32 %v267, %v213
    %v290 = vmul.f32 %v266, %v219
    %v291 = vmul.f32 %v267, %v219
    %v292 = vmul.f32 %v266, %v225
    %v293 = vmul.f32 %v267, %v225
    %v294 = vmul.f32 %v266, %v231
    %v295 = vmul.f32 %v267, %v231
    %v296 = vmul.f32 %v268, %v213
    %v297 = vmul.f32 %v269, %v213
    %v298 = vmul.f32 %v268, %v219
    %v299 = vmul.f32 %v269, %v219
    %v300 = vmul.f32 %v268, %v225
    %v301 = vmul.f32 %v269, %v225
    %v302 = vmul.f32 %v268, %v231
    %v303 = vmul.f32 %v269, %v231
    %v304 = vmul.f32 %v270, %v213
    %v305 = vmul.f32 %v271, %v213
    %v306 = vmul.f32 %v270, %v219
    %v307 = vmul.f32 %v271, %v219
    %v308 = vmul.f32 %v270, %v225
    %v309 = vmul.f32 %v271, %v225
    %v310 = vmul.f32 %v270, %v231
    %v311 = vmul.f32 %v271, %v231
    %v312 = vmul.f32 %v272, %v213
    %v313 = vmul.f32 %v273, %v213
    %v314 = vmul.f32 %v272, %v219
    %v315 = vmul.f32 %v273, %v219
    %v316 = vmul.f32 %v272, %v225
    %v317 = vmul.f32 %v273, %v225
    %v318 = vmul.f32 %v272, %v231
    %v319 = vmul.f32 %v273, %v231
    %v320 = vmul.f32 %v274, %v213
    %v321 = vmul.f32 %v275, %v213
    %v322 = vmul.f32 %v274, %v219
    %v323 = vmul.f32 %v275, %v219
    %v324 = vmul.f32 %v274, %v225
    %v325 = vmul.f32 %v275, %v225
    %v326 = vmul.f32 %v274, %v231
    %v327 = vmul.f32 %v275, %v231
    %v328 = vmul.f32 %v276, %v213
    %v329 = vmul.f32 %v277, %v213
    %v330 = vmul.f32 %v276, %v219
    %v331 = vmul.f32 %v277, %v219
    %v332 = vmul.f32 %v276, %v225
    %v333 = vmul.f32 %v277, %v225
    %v334 = vmul.f32 %v276, %v231
    %v335 = vmul.f32 %v277, %v231
    %v336 = vmul.f32 %v278, %v213
    %v337 = vmul.f32 %v279, %v213
    %v338 = vmul.f32 %v278, %v219
    %v339 = vmul.f32 %v279, %v219
    %v340 = vmul.f32 %v278, %v225
    %v341 = vmul.f32 %v279, %v225
    %v342 = vmul.f32 %v278, %v231
    %v343 = vmul.f32 %v279, %v231
    %v344 = vadd.f32 %v143, %v280
    %v345 = vadd.f32 %v144, %v281
    %v346 = vadd.f32 %v145, %v282
    %v347 = vadd.f32 %v146, %v283
    %v348 = vadd.f32 %v147, %v284
    %v349 = vadd.f32 %v148, %v285
    %v350 = vadd.f32 %v149, %v286
    %v351 = vadd.f32 %v150, %v287
    %v352 = vadd.f32 %v151, %v288
    %v353 = vadd.f32 %v152, %v289
    %v354 = vadd.f32 %v153, %v290
    %v355 = vadd.f32 %v154, %v291
    %v356 = vadd.f32 %v155, %v292
    %v357 = vadd.f32 %v156, %v293
    %v358 = vadd.f32 %v157, %v294
    %v359 = vadd.f32 %v158, %v295
    %v360 = vadd.f32 %v159, %v296
    %v361 = vadd.f32 %v160, %v297
    %v362 = vadd.f32 %v161, %v298
    %v363 = vadd.f32 %v162, %v299
    %v364 = vadd.f32 %v163, %v300
    %v365 = vadd.f32 %v164, %v301
    %v366 = vadd.f32 %v165, %v302
    %v367 = vadd.f32 %v166, %v303
    %v368 = vadd.f32 %v167, %v304
    %v369 = vadd.f32 %v168, %v305
    %v370 = vadd.f32 %v169, %v306
    %v371 = vadd.f32 %v170, %v307
    %v372 = vadd.f32 %v171, %v308
    %v373 = vadd.f32 %v172, %v309
    %v374 = vadd.f32 %v173, %v310
    %v375 = vadd.f32 %v174, %v311
    %v376 = vadd.f32 %v175, %v312
    %v377 = vadd.f32 %v176, %v313
    %v378 = vadd.f32 %v177, %v314
    %v379 = vadd.f32 %v178, %v315
    %v380 = vadd.f32 %v179, %v316
    %v381 = vadd.f32 %v180, %v317
    %v382 = vadd.f32 %v181, %v318
    %v383 = vadd.f32 %v182, %v319
    %v384 = vadd.f32 %v183, %v320
    %v385 = vadd.f32 %v184, %v321
    %v386 = vadd.f32 %v185, %v322
    %v387 = vadd.f32 %v186, %v323
    %v388 = vadd.f32 %v187, %v324
    %v389 = vadd.f32 %v188, %v325
    %v390 = vadd.f32 %v189, %v326
    %v391 = vadd.f32 %v190, %v327
    %v392 = vadd.f32 %v191, %v328
    %v393 = vadd.f32 %v192, %v329
    %v394 = vadd.f32 %v193, %v330
    %v395 = vadd.f32 %v194, %v331
    %v396 = vadd.f32 %v195, %v332
    %v397 = vadd.f32 %v196, %v333
    %v398 = vadd.f32 %v197, %v334
    %v399 = vadd.f32 %v198, %v335
    %v400 = vadd.f32 %v199, %v336
    %v401 = vadd.f32 %v200, %v337
    %v402 = vadd.f32 %v201, %v338
    %v403 = vadd.f32 %v202, %v339
    %v404 = vadd.f32 %v203, %v340
    %v405 = vadd.f32 %v204, %v341
    %v406 = vadd.f32 %v205, %v342
    %v407 = vadd.f32 %v206, %v343
    %v408 = vperm.slane %v61, 2
    %v409 = vlaneseq
    %v410 = vshrl.u32 %v409, 7
    %412 = vset.pattern.permute.xlu0 %v410
    %413 = vperm.xlu0 %412, %v408
    %v414 = vpop.permute.xlu0 %413
    %v415 = vlaneseq
    %v416 = vshrl.u32 %v415, 7
    %v417 = vadd.s32 %v416, 8
    %418 = vset.pattern.permute.xlu0 %v417
    %419 = vperm.xlu0 %418, %v408
    %v420 = vpop.permute.xlu0 %419
    %v421 = vlaneseq
    %v422 = vshrl.u32 %v421, 7
    %v423 = vadd.s32 %v422, 16
    %424 = vset.pattern.permute.xlu0 %v423
    %425 = vperm.xlu0 %424, %v408
    %v426 = vpop.permute.xlu0 %425
    %v427 = vlaneseq
    %v428 = vshrl.u32 %v427, 7
    %v429 = vadd.s32 %v428, 24
    %430 = vset.pattern.permute.xlu0 %v429
    %431 = vperm.xlu0 %430, %v408
    %v432 = vpop.permute.xlu0 %431
    %v433 = vperm.slane %v53, 2
    %v434 = vperm.slane %v53, 6
    %v435 = vperm.slane %v54, 2
    %v436 = vperm.slane %v54, 6
    %v437 = vperm.slane %v55, 2
    %v438 = vperm.slane %v55, 6
    %v439 = vperm.slane %v56, 2
    %v440 = vperm.slane %v56, 6
    %v441 = vperm.slane %v57, 2
    %v442 = vperm.slane %v57, 6
    %v443 = vperm.slane %v58, 2
    %v444 = vperm.slane %v58, 6
    %v445 = vperm.slane %v59, 2
    %v446 = vperm.slane %v59, 6
    %v447 = vperm.slane %v60, 2
    %v448 = vperm.slane %v60, 6
    %v465 = vperm.slane %v433, 2
    %v466 = vperm.slane %v434, 2
    %v467 = vperm.slane %v435, 2
    %v468 = vperm.slane %v436, 2
    %v469 = vperm.slane %v437, 2
    %v470 = vperm.slane %v438, 2
    %v471 = vperm.slane %v439, 2
    %v472 = vperm.slane %v440, 2
    %v473 = vperm.slane %v441, 2
    %v474 = vperm.slane %v442, 2
    %v475 = vperm.slane %v443, 2
    %v476 = vperm.slane %v444, 2
    %v477 = vperm.slane %v445, 2
    %v478 = vperm.slane %v446, 2
    %v479 = vperm.slane %v447, 2
    %v480 = vperm.slane %v448, 2
    %v481 = vmul.f32 %v465, %v414
    %v482 = vmul.f32 %v466, %v414
    %v483 = vmul.f32 %v465, %v420
    %v484 = vmul.f32 %v466, %v420
    %v485 = vmul.f32 %v465, %v426
    %v486 = vmul.f32 %v466, %v426
    %v487 = vmul.f32 %v465, %v432
    %v488 = vmul.f32 %v466, %v432
    %v489 = vmul.f32 %v467, %v414
    %v490 = vmul.f32 %v468, %v414
    %v491 = vmul.f32 %v467, %v420
    %v492 = vmul.f32 %v468, %v420
    %v493 = vmul.f32 %v467, %v426
    %v494 = vmul.f32 %v468, %v426
    %v495 = vmul.f32 %v467, %v432
    %v496 = vmul.f32 %v468, %v432
    %v497 = vmul.f32 %v469, %v414
    %v498 = vmul.f32 %v470, %v414
    %v499 = vmul.f32 %v469, %v420
    %v500 = vmul.f32 %v470, %v420
    %v501 = vmul.f32 %v469, %v426
    %v502 = vmul.f32 %v470, %v426
    %v503 = vmul.f32 %v469, %v432
    %v504 = vmul.f32 %v470, %v432
    %v505 = vmul.f32 %v471, %v414
    %v506 = vmul.f32 %v472, %v414
    %v507 = vmul.f32 %v471, %v420
    %v508 = vmul.f32 %v472, %v420
    %v509 = vmul.f32 %v471, %v426
    %v510 = vmul.f32 %v472, %v426
    %v511 = vmul.f32 %v471, %v432
    %v512 = vmul.f32 %v472, %v432
    %v513 = vmul.f32 %v473, %v414
    %v514 = vmul.f32 %v474, %v414
    %v515 = vmul.f32 %v473, %v420
    %v516 = vmul.f32 %v474, %v420
    %v517 = vmul.f32 %v473, %v426
    %v518 = vmul.f32 %v474, %v426
    %v519 = vmul.f32 %v473, %v432
    %v520 = vmul.f32 %v474, %v432
    %v521 = vmul.f32 %v475, %v414
    %v522 = vmul.f32 %v476, %v414
    %v523 = vmul.f32 %v475, %v420
    %v524 = vmul.f32 %v476, %v420
    %v525 = vmul.f32 %v475, %v426
    %v526 = vmul.f32 %v476, %v426
    %v527 = vmul.f32 %v475, %v432
    %v528 = vmul.f32 %v476, %v432
    %v529 = vmul.f32 %v477, %v414
    %v530 = vmul.f32 %v478, %v414
    %v531 = vmul.f32 %v477, %v420
    %v532 = vmul.f32 %v478, %v420
    %v533 = vmul.f32 %v477, %v426
    %v534 = vmul.f32 %v478, %v426
    %v535 = vmul.f32 %v477, %v432
    %v536 = vmul.f32 %v478, %v432
    %v537 = vmul.f32 %v479, %v414
    %v538 = vmul.f32 %v480, %v414
    %v539 = vmul.f32 %v479, %v420
    %v540 = vmul.f32 %v480, %v420
    %v541 = vmul.f32 %v479, %v426
    %v542 = vmul.f32 %v480, %v426
    %v543 = vmul.f32 %v479, %v432
    %v544 = vmul.f32 %v480, %v432
    %v545 = vadd.f32 %v344, %v481
    %v546 = vadd.f32 %v345, %v482
    %v547 = vadd.f32 %v346, %v483
    %v548 = vadd.f32 %v347, %v484
    %v549 = vadd.f32 %v348, %v485
    %v550 = vadd.f32 %v349, %v486
    %v551 = vadd.f32 %v350, %v487
    %v552 = vadd.f32 %v351, %v488
    %v553 = vadd.f32 %v352, %v489
    %v554 = vadd.f32 %v353, %v490
    %v555 = vadd.f32 %v354, %v491
    %v556 = vadd.f32 %v355, %v492
    %v557 = vadd.f32 %v356, %v493
    %v558 = vadd.f32 %v357, %v494
    %v559 = vadd.f32 %v358, %v495
    %v560 = vadd.f32 %v359, %v496
    %v561 = vadd.f32 %v360, %v497
    %v562 = vadd.f32 %v361, %v498
    %v563 = vadd.f32 %v362, %v499
    %v564 = vadd.f32 %v363, %v500
    %v565 = vadd.f32 %v364, %v501
    %v566 = vadd.f32 %v365, %v502
    %v567 = vadd.f32 %v366, %v503
    %v568 = vadd.f32 %v367, %v504
    %v569 = vadd.f32 %v368, %v505
    %v570 = vadd.f32 %v369, %v506
    %v571 = vadd.f32 %v370, %v507
    %v572 = vadd.f32 %v371, %v508
    %v573 = vadd.f32 %v372, %v509
    %v574 = vadd.f32 %v373, %v510
    %v575 = vadd.f32 %v374, %v511
    %v576 = vadd.f32 %v375, %v512
    %v577 = vadd.f32 %v376, %v513
    %v578 = vadd.f32 %v377, %v514
    %v579 = vadd.f32 %v378, %v515
    %v580 = vadd.f32 %v379, %v516
    %v581 = vadd.f32 %v380, %v517
    %v582 = vadd.f32 %v381, %v518
    %v583 = vadd.f32 %v382, %v519
    %v584 = vadd.f32 %v383, %v520
    %v585 = vadd.f32 %v384, %v521
    %v586 = vadd.f32 %v385, %v522
    %v587 = vadd.f32 %v386, %v523
    %v588 = vadd.f32 %v387, %v524
    %v589 = vadd.f32 %v388, %v525
    %v590 = vadd.f32 %v389, %v526
    %v591 = vadd.f32 %v390, %v527
    %v592 = vadd.f32 %v391, %v528
    %v593 = vadd.f32 %v392, %v529
    %v594 = vadd.f32 %v393, %v530
    %v595 = vadd.f32 %v394, %v531
    %v596 = vadd.f32 %v395, %v532
    %v597 = vadd.f32 %v396, %v533
    %v598 = vadd.f32 %v397, %v534
    %v599 = vadd.f32 %v398, %v535
    %v600 = vadd.f32 %v399, %v536
    %v601 = vadd.f32 %v400, %v537
    %v602 = vadd.f32 %v401, %v538
    %v603 = vadd.f32 %v402, %v539
    %v604 = vadd.f32 %v403, %v540
    %v605 = vadd.f32 %v404, %v541
    %v606 = vadd.f32 %v405, %v542
    %v607 = vadd.f32 %v406, %v543
    %v608 = vadd.f32 %v407, %v544
    %v609 = vperm.slane %v61, 3
    %v610 = vlaneseq
    %v611 = vshrl.u32 %v610, 7
    %613 = vset.pattern.permute.xlu0 %v611
    %614 = vperm.xlu0 %613, %v609
    %v615 = vpop.permute.xlu0 %614
    %v616 = vlaneseq
    %v617 = vshrl.u32 %v616, 7
    %v618 = vadd.s32 %v617, 8
    %619 = vset.pattern.permute.xlu0 %v618
    %620 = vperm.xlu0 %619, %v609
    %v621 = vpop.permute.xlu0 %620
    %v622 = vlaneseq
    %v623 = vshrl.u32 %v622, 7
    %v624 = vadd.s32 %v623, 16
    %625 = vset.pattern.permute.xlu0 %v624
    %626 = vperm.xlu0 %625, %v609
    %v627 = vpop.permute.xlu0 %626
    %v628 = vlaneseq
    %v629 = vshrl.u32 %v628, 7
    %v630 = vadd.s32 %v629, 24
    %631 = vset.pattern.permute.xlu0 %v630
    %632 = vperm.xlu0 %631, %v609
    %v633 = vpop.permute.xlu0 %632
    %v634 = vperm.slane %v53, 3
    %v635 = vperm.slane %v53, 7
    %v636 = vperm.slane %v54, 3
    %v637 = vperm.slane %v54, 7
    %v638 = vperm.slane %v55, 3
    %v639 = vperm.slane %v55, 7
    %v640 = vperm.slane %v56, 3
    %v641 = vperm.slane %v56, 7
    %v642 = vperm.slane %v57, 3
    %v643 = vperm.slane %v57, 7
    %v644 = vperm.slane %v58, 3
    %v645 = vperm.slane %v58, 7
    %v646 = vperm.slane %v59, 3
    %v647 = vperm.slane %v59, 7
    %v648 = vperm.slane %v60, 3
    %v649 = vperm.slane %v60, 7
    %v666 = vperm.slane %v634, 3
    %v667 = vperm.slane %v635, 3
    %v668 = vperm.slane %v636, 3
    %v669 = vperm.slane %v637, 3
    %v670 = vperm.slane %v638, 3
    %v671 = vperm.slane %v639, 3
    %v672 = vperm.slane %v640, 3
    %v673 = vperm.slane %v641, 3
    %v674 = vperm.slane %v642, 3
    %v675 = vperm.slane %v643, 3
    %v676 = vperm.slane %v644, 3
    %v677 = vperm.slane %v645, 3
    %v678 = vperm.slane %v646, 3
    %v679 = vperm.slane %v647, 3
    %v680 = vperm.slane %v648, 3
    %v681 = vperm.slane %v649, 3
    %v682 = vmul.f32 %v666, %v615
    %v683 = vmul.f32 %v667, %v615
    %v684 = vmul.f32 %v666, %v621
    %v685 = vmul.f32 %v667, %v621
    %v686 = vmul.f32 %v666, %v627
    %v687 = vmul.f32 %v667, %v627
    %v688 = vmul.f32 %v666, %v633
    %v689 = vmul.f32 %v667, %v633
    %v690 = vmul.f32 %v668, %v615
    %v691 = vmul.f32 %v669, %v615
    %v692 = vmul.f32 %v668, %v621
    %v693 = vmul.f32 %v669, %v621
    %v694 = vmul.f32 %v668, %v627
    %v695 = vmul.f32 %v669, %v627
    %v696 = vmul.f32 %v668, %v633
    %v697 = vmul.f32 %v669, %v633
    %v698 = vmul.f32 %v670, %v615
    %v699 = vmul.f32 %v671, %v615
    %v700 = vmul.f32 %v670, %v621
    %v701 = vmul.f32 %v671, %v621
    %v702 = vmul.f32 %v670, %v627
    %v703 = vmul.f32 %v671, %v627
    %v704 = vmul.f32 %v670, %v633
    %v705 = vmul.f32 %v671, %v633
    %v706 = vmul.f32 %v672, %v615
    %v707 = vmul.f32 %v673, %v615
    %v708 = vmul.f32 %v672, %v621
    %v709 = vmul.f32 %v673, %v621
    %v710 = vmul.f32 %v672, %v627
    %v711 = vmul.f32 %v673, %v627
    %v712 = vmul.f32 %v672, %v633
    %v713 = vmul.f32 %v673, %v633
    %v714 = vmul.f32 %v674, %v615
    %v715 = vmul.f32 %v675, %v615
    %v716 = vmul.f32 %v674, %v621
    %v717 = vmul.f32 %v675, %v621
    %v718 = vmul.f32 %v674, %v627
    %v719 = vmul.f32 %v675, %v627
    %v720 = vmul.f32 %v674, %v633
    %v721 = vmul.f32 %v675, %v633
    %v722 = vmul.f32 %v676, %v615
    %v723 = vmul.f32 %v677, %v615
    %v724 = vmul.f32 %v676, %v621
    %v725 = vmul.f32 %v677, %v621
    %v726 = vmul.f32 %v676, %v627
    %v727 = vmul.f32 %v677, %v627
    %v728 = vmul.f32 %v676, %v633
    %v729 = vmul.f32 %v677, %v633
    %v730 = vmul.f32 %v678, %v615
    %v731 = vmul.f32 %v679, %v615
    %v732 = vmul.f32 %v678, %v621
    %v733 = vmul.f32 %v679, %v621
    %v734 = vmul.f32 %v678, %v627
    %v735 = vmul.f32 %v679, %v627
    %v736 = vmul.f32 %v678, %v633
    %v737 = vmul.f32 %v679, %v633
    %v738 = vmul.f32 %v680, %v615
    %v739 = vmul.f32 %v681, %v615
    %v740 = vmul.f32 %v680, %v621
    %v741 = vmul.f32 %v681, %v621
    %v742 = vmul.f32 %v680, %v627
    %v743 = vmul.f32 %v681, %v627
    %v744 = vmul.f32 %v680, %v633
    %v745 = vmul.f32 %v681, %v633
    %v746 = vadd.f32 %v545, %v682
    %v747 = vadd.f32 %v546, %v683
    %v748 = vadd.f32 %v547, %v684
    %v749 = vadd.f32 %v548, %v685
    %v750 = vadd.f32 %v549, %v686
    %v751 = vadd.f32 %v550, %v687
    %v752 = vadd.f32 %v551, %v688
    %v753 = vadd.f32 %v552, %v689
    %v754 = vadd.f32 %v553, %v690
    %v755 = vadd.f32 %v554, %v691
    %v756 = vadd.f32 %v555, %v692
    %v757 = vadd.f32 %v556, %v693
    %v758 = vadd.f32 %v557, %v694
    %v759 = vadd.f32 %v558, %v695
    %v760 = vadd.f32 %v559, %v696
    %v761 = vadd.f32 %v560, %v697
    %v762 = vadd.f32 %v561, %v698
    %v763 = vadd.f32 %v562, %v699
    %v764 = vadd.f32 %v563, %v700
    %v765 = vadd.f32 %v564, %v701
    %v766 = vadd.f32 %v565, %v702
    %v767 = vadd.f32 %v566, %v703
    %v768 = vadd.f32 %v567, %v704
    %v769 = vadd.f32 %v568, %v705
    %v770 = vadd.f32 %v569, %v706
    %v771 = vadd.f32 %v570, %v707
    %v772 = vadd.f32 %v571, %v708
    %v773 = vadd.f32 %v572, %v709
    %v774 = vadd.f32 %v573, %v710
    %v775 = vadd.f32 %v574, %v711
    %v776 = vadd.f32 %v575, %v712
    %v777 = vadd.f32 %v576, %v713
    %v778 = vadd.f32 %v577, %v714
    %v779 = vadd.f32 %v578, %v715
    %v780 = vadd.f32 %v579, %v716
    %v781 = vadd.f32 %v580, %v717
    %v782 = vadd.f32 %v581, %v718
    %v783 = vadd.f32 %v582, %v719
    %v784 = vadd.f32 %v583, %v720
    %v785 = vadd.f32 %v584, %v721
    %v786 = vadd.f32 %v585, %v722
    %v787 = vadd.f32 %v586, %v723
    %v788 = vadd.f32 %v587, %v724
    %v789 = vadd.f32 %v588, %v725
    %v790 = vadd.f32 %v589, %v726
    %v791 = vadd.f32 %v590, %v727
    %v792 = vadd.f32 %v591, %v728
    %v793 = vadd.f32 %v592, %v729
    %v794 = vadd.f32 %v593, %v730
    %v795 = vadd.f32 %v594, %v731
    %v796 = vadd.f32 %v595, %v732
    %v797 = vadd.f32 %v596, %v733
    %v798 = vadd.f32 %v597, %v734
    %v799 = vadd.f32 %v598, %v735
    %v800 = vadd.f32 %v599, %v736
    %v801 = vadd.f32 %v600, %v737
    %v802 = vadd.f32 %v601, %v738
    %v803 = vadd.f32 %v602, %v739
    %v804 = vadd.f32 %v603, %v740
    %v805 = vadd.f32 %v604, %v741
    %v806 = vadd.f32 %v605, %v742
    %v807 = vadd.f32 %v606, %v743
    %v808 = vadd.f32 %v607, %v744
    %v809 = vadd.f32 %v608, %v745
    %v810 = vld [vmem:[%s2] sm:$0xff]
    %v811 = vld [vmem:[%s2 + $0x8] sm:$0xff]
    %v812 = vld [vmem:[%s2 + $0x10] sm:$0xff]
    %v813 = vld [vmem:[%s2 + $0x18] sm:$0xff]
    %815 = vset.pattern.permute.xlu0 0
    %816 = vperm.xlu0 %815, %v810
    %v817 = vpop.permute.xlu0 %816
    %820 = vset.pattern.permute.xlu0 0
    %821 = vperm.xlu0 %820, %v811
    %v822 = vpop.permute.xlu0 %821
    %825 = vset.pattern.permute.xlu0 0
    %826 = vperm.xlu0 %825, %v812
    %v827 = vpop.permute.xlu0 %826
    %830 = vset.pattern.permute.xlu0 0
    %831 = vperm.xlu0 %830, %v813
    %v832 = vpop.permute.xlu0 %831
    %v834 = vadd.f32 %v746, %v817
    %v835 = vadd.f32 %v747, %v817
    %v836 = vadd.f32 %v748, %v822
    %v837 = vadd.f32 %v749, %v822
    %v838 = vadd.f32 %v750, %v827
    %v839 = vadd.f32 %v751, %v827
    %v840 = vadd.f32 %v752, %v832
    %v841 = vadd.f32 %v753, %v832
    %v842 = vadd.f32 %v754, %v817
    %v843 = vadd.f32 %v755, %v817
    %v844 = vadd.f32 %v756, %v822
    %v845 = vadd.f32 %v757, %v822
    %v846 = vadd.f32 %v758, %v827
    %v847 = vadd.f32 %v759, %v827
    %v848 = vadd.f32 %v760, %v832
    %v849 = vadd.f32 %v761, %v832
    %v850 = vadd.f32 %v762, %v817
    %v851 = vadd.f32 %v763, %v817
    %v852 = vadd.f32 %v764, %v822
    %v853 = vadd.f32 %v765, %v822
    %v854 = vadd.f32 %v766, %v827
    %v855 = vadd.f32 %v767, %v827
    %v856 = vadd.f32 %v768, %v832
    %v857 = vadd.f32 %v769, %v832
    %v858 = vadd.f32 %v770, %v817
    %v859 = vadd.f32 %v771, %v817
    %v860 = vadd.f32 %v772, %v822
    %v861 = vadd.f32 %v773, %v822
    %v862 = vadd.f32 %v774, %v827
    %v863 = vadd.f32 %v775, %v827
    %v864 = vadd.f32 %v776, %v832
    %v865 = vadd.f32 %v777, %v832
    %v866 = vadd.f32 %v778, %v817
    %v867 = vadd.f32 %v779, %v817
    %v868 = vadd.f32 %v780, %v822
    %v869 = vadd.f32 %v781, %v822
    %v870 = vadd.f32 %v782, %v827
    %v871 = vadd.f32 %v783, %v827
    %v872 = vadd.f32 %v784, %v832
    %v873 = vadd.f32 %v785, %v832
    %v874 = vadd.f32 %v786, %v817
    %v875 = vadd.f32 %v787, %v817
    %v876 = vadd.f32 %v788, %v822
    %v877 = vadd.f32 %v789, %v822
    %v878 = vadd.f32 %v790, %v827
    %v879 = vadd.f32 %v791, %v827
    %v880 = vadd.f32 %v792, %v832
    %v881 = vadd.f32 %v793, %v832
    %v882 = vadd.f32 %v794, %v817
    %v883 = vadd.f32 %v795, %v817
    %v884 = vadd.f32 %v796, %v822
    %v885 = vadd.f32 %v797, %v822
    %v886 = vadd.f32 %v798, %v827
    %v887 = vadd.f32 %v799, %v827
    %v888 = vadd.f32 %v800, %v832
    %v889 = vadd.f32 %v801, %v832
    %v890 = vadd.f32 %v802, %v817
    %v891 = vadd.f32 %v803, %v817
    %v892 = vadd.f32 %v804, %v822
    %v893 = vadd.f32 %v805, %v822
    %v894 = vadd.f32 %v806, %v827
    %v895 = vadd.f32 %v807, %v827
    %v896 = vadd.f32 %v808, %v832
    %v897 = vadd.f32 %v809, %v832
    %v898 = vmax.f32 %v834, 0.0
    %v899 = vmax.f32 %v835, 0.0
    %v900 = vmax.f32 %v836, 0.0
    %v901 = vmax.f32 %v837, 0.0
    %v902 = vmax.f32 %v838, 0.0
    %v903 = vmax.f32 %v839, 0.0
    %v904 = vmax.f32 %v840, 0.0
    %v905 = vmax.f32 %v841, 0.0
    %v906 = vmax.f32 %v842, 0.0
    %v907 = vmax.f32 %v843, 0.0
    %v908 = vmax.f32 %v844, 0.0
    %v909 = vmax.f32 %v845, 0.0
    %v910 = vmax.f32 %v846, 0.0
    %v911 = vmax.f32 %v847, 0.0
    %v912 = vmax.f32 %v848, 0.0
    %v913 = vmax.f32 %v849, 0.0
    %v914 = vmax.f32 %v850, 0.0
    %v915 = vmax.f32 %v851, 0.0
    %v916 = vmax.f32 %v852, 0.0
    %v917 = vmax.f32 %v853, 0.0
    %v918 = vmax.f32 %v854, 0.0
    %v919 = vmax.f32 %v855, 0.0
    %v920 = vmax.f32 %v856, 0.0
    %v921 = vmax.f32 %v857, 0.0
    %v922 = vmax.f32 %v858, 0.0
    %v923 = vmax.f32 %v859, 0.0
    %v924 = vmax.f32 %v860, 0.0
    %v925 = vmax.f32 %v861, 0.0
    %v926 = vmax.f32 %v862, 0.0
    %v927 = vmax.f32 %v863, 0.0
    %v928 = vmax.f32 %v864, 0.0
    %v929 = vmax.f32 %v865, 0.0
    %v930 = vmax.f32 %v866, 0.0
    %v931 = vmax.f32 %v867, 0.0
    %v932 = vmax.f32 %v868, 0.0
    %v933 = vmax.f32 %v869, 0.0
    %v934 = vmax.f32 %v870, 0.0
    %v935 = vmax.f32 %v871, 0.0
    %v936 = vmax.f32 %v872, 0.0
    %v937 = vmax.f32 %v873, 0.0
    %v938 = vmax.f32 %v874, 0.0
    %v939 = vmax.f32 %v875, 0.0
    %v940 = vmax.f32 %v876, 0.0
    %v941 = vmax.f32 %v877, 0.0
    %v942 = vmax.f32 %v878, 0.0
    %v943 = vmax.f32 %v879, 0.0
    %v944 = vmax.f32 %v880, 0.0
    %v945 = vmax.f32 %v881, 0.0
    %v946 = vmax.f32 %v882, 0.0
    %v947 = vmax.f32 %v883, 0.0
    %v948 = vmax.f32 %v884, 0.0
    %v949 = vmax.f32 %v885, 0.0
    %v950 = vmax.f32 %v886, 0.0
    %v951 = vmax.f32 %v887, 0.0
    %v952 = vmax.f32 %v888, 0.0
    %v953 = vmax.f32 %v889, 0.0
    %v954 = vmax.f32 %v890, 0.0
    %v955 = vmax.f32 %v891, 0.0
    %v956 = vmax.f32 %v892, 0.0
    %v957 = vmax.f32 %v893, 0.0
    %v958 = vmax.f32 %v894, 0.0
    %v959 = vmax.f32 %v895, 0.0
    %v960 = vmax.f32 %v896, 0.0
    %v961 = vmax.f32 %v897, 0.0
    %v962 = vadd.f32 %v898, %v899
    %963 = vadd.xlane.f32.xlu0 %v962
    %v964 = vpop.xlane.xlu0 %963
    %v965 = vadd.f32 %v900, %v901
    %966 = vadd.xlane.f32.xlu0 %v965
    %v967 = vpop.xlane.xlu0 %966
    %v968 = vadd.f32 %v902, %v903
    %969 = vadd.xlane.f32.xlu0 %v968
    %v970 = vpop.xlane.xlu0 %969
    %v971 = vadd.f32 %v904, %v905
    %972 = vadd.xlane.f32.xlu0 %v971
    %v973 = vpop.xlane.xlu0 %972
    %v974 = vadd.f32 %v906, %v907
    %975 = vadd.xlane.f32.xlu0 %v974
    %v976 = vpop.xlane.xlu0 %975
    %v977 = vadd.f32 %v908, %v909
    %978 = vadd.xlane.f32.xlu0 %v977
    %v979 = vpop.xlane.xlu0 %978
    %v980 = vadd.f32 %v910, %v911
    %981 = vadd.xlane.f32.xlu0 %v980
    %v982 = vpop.xlane.xlu0 %981
    %v983 = vadd.f32 %v912, %v913
    %984 = vadd.xlane.f32.xlu0 %v983
    %v985 = vpop.xlane.xlu0 %984
    %v986 = vadd.f32 %v914, %v915
    %987 = vadd.xlane.f32.xlu0 %v986
    %v988 = vpop.xlane.xlu0 %987
    %v989 = vadd.f32 %v916, %v917
    %990 = vadd.xlane.f32.xlu0 %v989
    %v991 = vpop.xlane.xlu0 %990
    %v992 = vadd.f32 %v918, %v919
    %993 = vadd.xlane.f32.xlu0 %v992
    %v994 = vpop.xlane.xlu0 %993
    %v995 = vadd.f32 %v920, %v921
    %996 = vadd.xlane.f32.xlu0 %v995
    %v997 = vpop.xlane.xlu0 %996
    %v998 = vadd.f32 %v922, %v923
    %999 = vadd.xlane.f32.xlu0 %v998
    %v1000 = vpop.xlane.xlu0 %999
    %v1001 = vadd.f32 %v924, %v925
    %1002 = vadd.xlane.f32.xlu0 %v1001
    %v1003 = vpop.xlane.xlu0 %1002
    %v1004 = vadd.f32 %v926, %v927
    %1005 = vadd.xlane.f32.xlu0 %v1004
    %v1006 = vpop.xlane.xlu0 %1005
    %v1007 = vadd.f32 %v928, %v929
    %1008 = vadd.xlane.f32.xlu0 %v1007
    %v1009 = vpop.xlane.xlu0 %1008
    %v1010 = vadd.f32 %v930, %v931
    %1011 = vadd.xlane.f32.xlu0 %v1010
    %v1012 = vpop.xlane.xlu0 %1011
    %v1013 = vadd.f32 %v932, %v933
    %1014 = vadd.xlane.f32.xlu0 %v1013
    %v1015 = vpop.xlane.xlu0 %1014
    %v1016 = vadd.f32 %v934, %v935
    %1017 = vadd.xlane.f32.xlu0 %v1016
    %v1018 = vpop.xlane.xlu0 %1017
    %v1019 = vadd.f32 %v936, %v937
    %1020 = vadd.xlane.f32.xlu0 %v1019
    %v1021 = vpop.xlane.xlu0 %1020
    %v1022 = vadd.f32 %v938, %v939
    %1023 = vadd.xlane.f32.xlu0 %v1022
    %v1024 = vpop.xlane.xlu0 %1023
    %v1025 = vadd.f32 %v940, %v941
    %1026 = vadd.xlane.f32.xlu0 %v1025
    %v1027 = vpop.xlane.xlu0 %1026
    %v1028 = vadd.f32 %v942, %v943
    %1029 = vadd.xlane.f32.xlu0 %v1028
    %v1030 = vpop.xlane.xlu0 %1029
    %v1031 = vadd.f32 %v944, %v945
    %1032 = vadd.xlane.f32.xlu0 %v1031
    %v1033 = vpop.xlane.xlu0 %1032
    %v1034 = vadd.f32 %v946, %v947
    %1035 = vadd.xlane.f32.xlu0 %v1034
    %v1036 = vpop.xlane.xlu0 %1035
    %v1037 = vadd.f32 %v948, %v949
    %1038 = vadd.xlane.f32.xlu0 %v1037
    %v1039 = vpop.xlane.xlu0 %1038
    %v1040 = vadd.f32 %v950, %v951
    %1041 = vadd.xlane.f32.xlu0 %v1040
    %v1042 = vpop.xlane.xlu0 %1041
    %v1043 = vadd.f32 %v952, %v953
    %1044 = vadd.xlane.f32.xlu0 %v1043
    %v1045 = vpop.xlane.xlu0 %1044
    %v1046 = vadd.f32 %v954, %v955
    %1047 = vadd.xlane.f32.xlu0 %v1046
    %v1048 = vpop.xlane.xlu0 %1047
    %v1049 = vadd.f32 %v956, %v957
    %1050 = vadd.xlane.f32.xlu0 %v1049
    %v1051 = vpop.xlane.xlu0 %1050
    %v1052 = vadd.f32 %v958, %v959
    %1053 = vadd.xlane.f32.xlu0 %v1052
    %v1054 = vpop.xlane.xlu0 %1053
    %v1055 = vadd.f32 %v960, %v961
    %1056 = vadd.xlane.f32.xlu0 %v1055
    %v1057 = vpop.xlane.xlu0 %1056
    %v1058 = vld [vmem:[#allocation5] sm:$0xff]
    %v1059 = vld [vmem:[#allocation5 + $0x8] sm:$0xff]
    %v1060 = vld [vmem:[#allocation5 + $0x10] sm:$0xff]
    %v1061 = vld [vmem:[#allocation5 + $0x18] sm:$0xff]
    %v1062 = vld [vmem:[#allocation5 + $0x20] sm:$0xff]
    %v1063 = vld [vmem:[#allocation5 + $0x28] sm:$0xff]
    %v1064 = vld [vmem:[#allocation5 + $0x30] sm:$0xff]
    %v1065 = vld [vmem:[#allocation5 + $0x38] sm:$0xff]
    %v1066 = vld [vmem:[#allocation5 + $0x40] sm:$0xff]
    %v1067 = vld [vmem:[#allocation5 + $0x48] sm:$0xff]
    %v1068 = vld [vmem:[#allocation5 + $0x50] sm:$0xff]
    %v1069 = vld [vmem:[#allocation5 + $0x58] sm:$0xff]
    %v1070 = vld [vmem:[#allocation5 + $0x60] sm:$0xff]
    %v1071 = vld [vmem:[#allocation5 + $0x68] sm:$0xff]
    %v1072 = vld [vmem:[#allocation5 + $0x70] sm:$0xff]
    %v1073 = vld [vmem:[#allocation5 + $0x78] sm:$0xff]
    %v1074 = vld [vmem:[%s4] sm:$0xf]
    %v1076 = vperm.slane %v1074, 0
    %v1077 = vperm.slane %v1074, 1
    %v1078 = vperm.slane %v1074, 2
    %v1079 = vperm.slane %v1074, 3
    %v1116 = vlaneseq
    %v1117 = vand.u32 %v1116, 127
    %v1118 = vperm.slane %v964, %v1117
    %v1119 = vadd.s32 %v1117, 4294967288
    %v1120 = vperm.slane %v967, %v1119
    %vm1121 = vcmask 130112
    %v1122 = vsel %vm1121, %v1120, %v1118
    %v1123 = vadd.s32 %v1117, 4294967280
    %v1124 = vperm.slane %v970, %v1123
    %vm1125 = vcmask 195712
    %v1126 = vsel %vm1125, %v1124, %v1122
    %v1127 = vadd.s32 %v1117, 4294967272
    %v1128 = vperm.slane %v973, %v1127
    %vm1129 = vcmask 261312
    %v1130 = vsel %vm1129, %v1128, %v1126
    %v1131 = vperm.slane %v976, %v1117
    %v1132 = vperm.slane %v979, %v1119
    %v1133 = vsel %vm1121, %v1132, %v1131
    %v1134 = vperm.slane %v982, %v1123
    %v1135 = vsel %vm1125, %v1134, %v1133
    %v1136 = vperm.slane %v985, %v1127
    %v1137 = vsel %vm1129, %v1136, %v1135
    %v1138 = vperm.slane %v988, %v1117
    %v1139 = vperm.slane %v991, %v1119
    %v1140 = vsel %vm1121, %v1139, %v1138
    %v1141 = vperm.slane %v994, %v1123
    %v1142 = vsel %vm1125, %v1141, %v1140
    %v1143 = vperm.slane %v997, %v1127
    %v1144 = vsel %vm1129, %v1143, %v1142
    %v1145 = vperm.slane %v1000, %v1117
    %v1146 = vperm.slane %v1003, %v1119
    %v1147 = vsel %vm1121, %v1146, %v1145
    %v1148 = vperm.slane %v1006, %v1123
    %v1149 = vsel %vm1125, %v1148, %v1147
    %v1150 = vperm.slane %v1009, %v1127
    %v1151 = vsel %vm1129, %v1150, %v1149
    %v1152 = vperm.slane %v1012, %v1117
    %v1153 = vperm.slane %v1015, %v1119
    %v1154 = vsel %vm1121, %v1153, %v1152
    %v1155 = vperm.slane %v1018, %v1123
    %v1156 = vsel %vm1125, %v1155, %v1154
    %v1157 = vperm.slane %v1021, %v1127
    %v1158 = vsel %vm1129, %v1157, %v1156
    %v1159 = vperm.slane %v1024, %v1117
    %v1160 = vperm.slane %v1027, %v1119
    %v1161 = vsel %vm1121, %v1160, %v1159
    %v1162 = vperm.slane %v1030, %v1123
    %v1163 = vsel %vm1125, %v1162, %v1161
    %v1164 = vperm.slane %v1033, %v1127
    %v1165 = vsel %vm1129, %v1164, %v1163
    %v1166 = vperm.slane %v1036, %v1117
    %v1167 = vperm.slane %v1039, %v1119
    %v1168 = vsel %vm1121, %v1167, %v1166
    %v1169 = vperm.slane %v1042, %v1123
    %v1170 = vsel %vm1125, %v1169, %v1168
    %v1171 = vperm.slane %v1045, %v1127
    %v1172 = vsel %vm1129, %v1171, %v1170
    %v1173 = vperm.slane %v1048, %v1117
    %v1174 = vperm.slane %v1051, %v1119
    %v1175 = vsel %vm1121, %v1174, %v1173
    %v1176 = vperm.slane %v1054, %v1123
    %v1177 = vsel %vm1125, %v1176, %v1175
    %v1178 = vperm.slane %v1057, %v1127
    %v1179 = vsel %vm1129, %v1178, %v1177
    %vm1180 = vcmask 1041409
    %v1181 = vsel %vm1180, %v1137, %v1130
    %vm1182 = vcmask 1042434
    %v1183 = vsel %vm1182, %v1144, %v1181
    %vm1184 = vcmask 1043459
    %v1185 = vsel %vm1184, %v1151, %v1183
    %vm1186 = vcmask 1044484
    %v1187 = vsel %vm1186, %v1158, %v1185
    %vm1188 = vcmask 1045509
    %v1189 = vsel %vm1188, %v1165, %v1187
    %vm1190 = vcmask 1046534
    %v1191 = vsel %vm1190, %v1172, %v1189
    %vm1192 = vcmask 1047559
    %v1193 = vsel %vm1192, %v1179, %v1191
    %vm1194 = vcmask 261120
    %v1195 = vsel %vm1194, %v1193, 0
    %1197 = vmatpush.msra.mxu0 0.0
    %1198 = vmatpush.msra.mxu0 0.0
    %1199 = vmatpush.msra.mxu0 0.0
    %1200 = vmatpush.msra.mxu0 0.0
    %1201 = vmatpush.msra.mxu0 0.0
    %1202 = vmatpush.msra.mxu0 0.0
    %1203 = vmatpush.msra.mxu0 0.0
    %1204 = vmatpush.msra.mxu0 0.0
    %1205 = vmatpush.msra.mxu0 0.0
    %1206 = vmatpush.msra.mxu0 0.0
    %1207 = vmatpush.msra.mxu0 0.0
    %1208 = vmatpush.msra.mxu0 0.0
    %1209 = vmatpush.msra.mxu0 %v1070
    %1210 = vmatpush.msra.mxu0 %v1066
    %1211 = vmatpush.msra.mxu0 %v1062
    %1212 = vmatpush.msra.mxu0 %v1058
    %1213 = vmatmul.f32.gmra.mxu0 %v1195
    %v1214 = vpop.f32.mrf.mxu0
    %v1215 = vadd.f32 %v1076, %v1214
    %1216 = vdwg.mxu0
    %1217 = vmatpush.msra.mxu0 0.0
    %1218 = vmatpush.msra.mxu0 0.0
    %1219 = vmatpush.msra.mxu0 0.0
    %1220 = vmatpush.msra.mxu0 0.0
    %1221 = vmatpush.msra.mxu0 0.0
    %1222 = vmatpush.msra.mxu0 0.0
    %1223 = vmatpush.msra.mxu0 0.0
    %1224 = vmatpush.msra.mxu0 0.0
    %1225 = vmatpush.msra.mxu0 0.0
    %1226 = vmatpush.msra.mxu0 0.0
    %1227 = vmatpush.msra.mxu0 0.0
    %1228 = vmatpush.msra.mxu0 0.0
    %1229 = vmatpush.msra.mxu0 %v1071
    %1230 = vmatpush.msra.mxu0 %v1067
    %1231 = vmatpush.msra.mxu0 %v1063
    %1232 = vmatpush.msra.mxu0 %v1059
    %1233 = vmatmul.f32.gmra.mxu0 %v1195
    %v1234 = vpop.f32.mrf.mxu0
    %v1235 = vadd.f32 %v1077, %v1234
    %1236 = vdwg.mxu0
    %1237 = vmatpush.msra.mxu0 0.0
    %1238 = vmatpush.msra.mxu0 0.0
    %1239 = vmatpush.msra.mxu0 0.0
    %1240 = vmatpush.msra.mxu0 0.0
    %1241 = vmatpush.msra.mxu0 0.0
    %1242 = vmatpush.msra.mxu0 0.0
    %1243 = vmatpush.msra.mxu0 0.0
    %1244 = vmatpush.msra.mxu0 0.0
    %1245 = vmatpush.msra.mxu0 0.0
    %1246 = vmatpush.msra.mxu0 0.0
    %1247 = vmatpush.msra.mxu0 0.0
    %1248 = vmatpush.msra.mxu0 0.0
    %1249 = vmatpush.msra.mxu0 %v1072
    %1250 = vmatpush.msra.mxu0 %v1068
    %1251 = vmatpush.msra.mxu0 %v1064
    %1252 = vmatpush.msra.mxu0 %v1060
    %1253 = vmatmul.f32.gmra.mxu0 %v1195
    %v1254 = vpop.f32.mrf.mxu0
    %v1255 = vadd.f32 %v1078, %v1254
    %1256 = vdwg.mxu0
    %1257 = vmatpush.msra.mxu0 0.0
    %1258 = vmatpush.msra.mxu0 0.0
    %1259 = vmatpush.msra.mxu0 0.0
    %1260 = vmatpush.msra.mxu0 0.0
    %1261 = vmatpush.msra.mxu0 0.0
    %1262 = vmatpush.msra.mxu0 0.0
    %1263 = vmatpush.msra.mxu0 0.0
    %1264 = vmatpush.msra.mxu0 0.0
    %1265 = vmatpush.msra.mxu0 0.0
    %1266 = vmatpush.msra.mxu0 0.0
    %1267 = vmatpush.msra.mxu0 0.0
    %1268 = vmatpush.msra.mxu0 0.0
    %1269 = vmatpush.msra.mxu0 %v1073
    %1270 = vmatpush.msra.mxu0 %v1069
    %1271 = vmatpush.msra.mxu0 %v1065
    %1272 = vmatpush.msra.mxu0 %v1061
    %1273 = vmatmul.f32.gmra.mxu0 %v1195
    %v1274 = vpop.f32.mrf.mxu0
    %v1275 = vadd.f32 %v1079, %v1274
    %1276 = vdwg.mxu0
    %v1277 = vmax.f32 %v1215, 0.0
    %v1278 = vmax.f32 %v1235, 0.0
    %v1279 = vmax.f32 %v1255, 0.0
    %v1280 = vmax.f32 %v1275, 0.0
    %1281 = vst [vmem:[#allocation7] sm:$0xff] %v1277
    %1282 = vst [vmem:[#allocation7 + $0x8] sm:$0xff] %v1278
    %1283 = vst [vmem:[#allocation7 + $0x10] sm:$0xff] %v1279
    %1284 = vst [vmem:[#allocation7 + $0x18] sm:$0xff] %v1280
    // Predicated region
    $region30: #{tpu_custom_call.1} parent=1 // pred_check
      _
    $region31: #{tpu_custom_call.1} parent=1 // pred_check_branch
      %1286 = sbr.rel (0) target = $region33
    $region32: #{tpu_custom_call.1} parent=1 // pred_region
      %1288 = vsyncadd [#allocation4], 0
      %s1290 = sshll.u32 [#allocation7], 4
      %s1291 = int_to_ptr.vmem [resolvable:$true] %s1290
      %s1292 = sshll.u32 %s5, 4
      %s1293 = int_to_ptr.hbm [resolvable:$true] %s1292
      %1295 = dma.vmem_to_hbm [thread:$0]  %s1291, 512, %s1293, [#allocation4]
    $region33: #{tpu_custom_call.1} parent=1 // pred_fallthru
      _
    // Predicated region
    $region34: #{tpu_custom_call.1} parent=1 // pred_check
      _
    $region35: #{tpu_custom_call.1} parent=1 // pred_check_branch
      %1297 = sbr.rel (0) target = $region37
    $region36: #{tpu_custom_call.1} parent=1 // pred_region
      %1299 = dma.done [#allocation4], 512
    $region37: #{tpu_custom_call.1} parent=1 // pred_fallthru
      _
    %1300 = vsyncpa [#allocation3], 1
    %1301 = vsyncpa [#allocation6], 1
    %1302 = vsyncpa [#allocation4], 1

</llo_original>
